<compile_context>
chip_gen: v5e
topology: v5e:2x2
jax: 0.10.0
libtpu: 0.0.40
codegen_flags: <defaults>
</compile_context>

<pallas_src>
import jax
import jax.numpy as jnp
from jax.experimental import pallas as pl
from jax.experimental.pallas import tpu as pltpu


def _lstm_policy_kernel(x_ref, w_ih_ref, bias_ref, w_hh_ref, w_out_ref, b_out_ref, out_ref):
    """Fused input projection + LSTM recurrence + output head.

    x_ref     : (B, T, I)  f32   raw inputs (batch-first, as PyTorch)
    w_ih_ref  : (I, 4H)    f32   weight_ih_l0 transposed
    bias_ref  : (1, 4H)    f32   bias_ih_l0 + bias_hh_l0
    w_hh_ref  : (H, 4H)    bf16  weight_hh_l0 transposed (MXU-native operand dtype)
    w_out_ref : (H, 2)     f32   output_layer.weight transposed
    b_out_ref : (1, 2)     f32   output_layer.bias
    out_ref   : (B, 2)     f32
    """
    B, T, I = x_ref.shape
    H = w_hh_ref.shape[0]
    H4 = 4 * H

    # Hoist all weight/bias loads once (no per-step VMEM traffic).
    w_ih = w_ih_ref[...]
    bias = bias_ref[...]
    w_hh = w_hh_ref[...]          # bf16
    w_out = w_out_ref[...]
    b_out = b_out_ref[...]

    # ---- Fused input projection: one MXU pass over all timesteps, off the serial path.
    # (B,T,I) -> (B*T,I) keeps the minor dim; rows are batch-major (row = b*T + t).
    x_flat = x_ref[...].reshape(B * T, I)
    proj = jnp.dot(x_flat, w_ih, preferred_element_type=jnp.float32) + bias   # (B*T, 4H) f32
    proj = proj.reshape(B, T, H4)                                             # no-op relayout

    # ---- Serial recurrence: h/c carried in vregs, loop fully unrolled (static T).
    h = jnp.zeros((B, H), jnp.float32)
    c = jnp.zeros((B, H), jnp.float32)
    for t in range(T):  # static unroll -> static slices, full LLO scheduling visibility
        # Only the truly recurrent matmul sits on the dependent chain; bf16 operands,
        # f32 accumulate (bf16 MXU path on all three chip generations).
        gates = proj[:, t, :] + jnp.dot(
            h.astype(jnp.bfloat16), w_hh, preferred_element_type=jnp.float32)   # (B, 4H) f32
        # Two whole-(B,4H) EUP passes instead of four per-gate slices.
        sig = jax.nn.sigmoid(gates)
        tnh = jnp.tanh(gates)
        # PyTorch gate order: i, f, g, o  (slices are static lane selects on the XLU).
        i_g = sig[:, 0 * H:1 * H]
        f_g = sig[:, 1 * H:2 * H]
        g_g = tnh[:, 2 * H:3 * H]
        o_g = sig[:, 3 * H:4 * H]
        c = f_g * c + i_g * g_g
        h = o_g * jnp.tanh(c)

    # hidden_activation on the last LSTM output, then output layer + output_activation.
    hidden = jax.nn.sigmoid(h)                                                # (B, H)
    logits = jnp.dot(hidden, w_out, preferred_element_type=jnp.float32) + b_out
    out_ref[...] = jax.nn.sigmoid(logits)                                     # (B, 2)


def prepare_params(params):
    """One-time parameter prep (transposes + bias fold + bf16 cast), NOT per forward call."""
    H = params["weight_hh"].shape[1]            # weight_hh: (4H, H)
    return {
        "w_ih_t": jnp.transpose(params["weight_ih"]).astype(jnp.float32),          # (I, 4H)
        "w_hh_t_bf16": jnp.transpose(params["weight_hh"]).astype(jnp.bfloat16),    # (H, 4H)
        "bias": (params["bias_ih"] + params["bias_hh"]).astype(jnp.float32).reshape(1, 4 * H),
        "w_out_t": jnp.transpose(params["out_weight"]).astype(jnp.float32),        # (H, 2)
        "b_out": params["out_bias"].astype(jnp.float32).reshape(1, -1),            # (1, 2)
    }


@jax.jit
def lstm_sigmoid_policy_forward(inputs, prepared):
    """inputs: (B, T, I) float32, batch-first (PyTorch convention). Single pallas_call."""
    B, T, I = inputs.shape
    vmem = pl.BlockSpec(memory_space=pltpu.MemorySpace.VMEM)
    return pl.pallas_call(
        _lstm_policy_kernel,
        out_shape=jax.ShapeDtypeStruct((B, 2), jnp.float32),
        in_specs=[vmem] * 6,
        out_specs=vmem,
    )(
        inputs.astype(jnp.float32),
        prepared["w_ih_t"],
        prepared["bias"],
        prepared["w_hh_t_bf16"],
        prepared["w_out_t"],
        prepared["b_out"],
    )


def _reference_forward(inputs, params):
    """Pure-JAX f32 reference of the same PyTorch forward, for correctness checks."""
    B, T, I = inputs.shape
    H = params["weight_hh"].shape[1]
    w_ih, w_hh = params["weight_ih"], params["weight_hh"]
    b = params["bias_ih"] + params["bias_hh"]
    h = jnp.zeros((B, H), jnp.float32)
    c = jnp.zeros((B, H), jnp.float32)
    for t in range(T):
        g = inputs[:, t, :] @ w_ih.T + h @ w_hh.T + b
        i_g = jax.nn.sigmoid(g[:, 0 * H:1 * H])
        f_g = jax.nn.sigmoid(g[:, 1 * H:2 * H])
        g_g = jnp.tanh(g[:, 2 * H:3 * H])
        o_g = jax.nn.sigmoid(g[:, 3 * H:4 * H])
        c = f_g * c + i_g * g_g
        h = o_g * jnp.tanh(c)
    hidden = jax.nn.sigmoid(h)
    return jax.nn.sigmoid(hidden @ params["out_weight"].T + params["out_bias"])


def init_params(key, hidden_size=16, input_size=2, output_size=2):
    """Deterministic synthetic init matching PyTorch parameter shapes."""
    H, I, O = hidden_size, input_size, output_size
    ks = jax.random.split(key, 6)
    s = 1.0 / jnp.sqrt(H)
    return {
        "weight_ih": jax.random.uniform(ks[0], (4 * H, I), jnp.float32, -s, s),
        "weight_hh": jax.random.uniform(ks[1], (4 * H, H), jnp.float32, -s, s),
        "bias_ih":   jax.random.uniform(ks[2], (4 * H,), jnp.float32, -s, s),
        "bias_hh":   jax.random.uniform(ks[3], (4 * H,), jnp.float32, -s, s),
        "out_weight": jax.random.uniform(ks[4], (O, H), jnp.float32, -s, s),
        "out_bias":   jax.random.uniform(ks[5], (O,), jnp.float32, -s, s),
        # nn.Linear(H, H) `hidden_layer` exists in __init__ but is unused in forward.
    }


if __name__ == "__main__":
    key = jax.random.PRNGKey(0)
    k_x, k_p = jax.random.split(key)

    B, T, I, H = 2, 8, 2, 16
    inputs = jax.random.normal(k_x, (B, T, I), jnp.float32)
    params = init_params(k_p, hidden_size=H, input_size=I, output_size=2)
    prepared = prepare_params(params)   # one-time weight prep (incl. bf16 cast of w_hh)

    out = lstm_sigmoid_policy_forward(inputs, prepared)
    out = jax.block_until_ready(out)

    ref = _reference_forward(inputs, params)
    assert out.shape == (B, 2)
    # Looser tolerance than the all-f32 revision: the recurrent matmul now uses bf16
    # operands (f32 accumulate), as recommended for the bf16-native MXU.
    assert jnp.allclose(out, ref, atol=1e-2, rtol=1e-2), (out, ref)

    print("KERNEL_OK")
</pallas_src>

<mosaic_0001>
module attributes {stable_mosaic.version = 11 : i64} {
  func.func @_lstm_policy_kernel(%arg0: memref<2x8x2xf32, #tpu.memory_space<vmem>>, %arg1: memref<2x64xf32, #tpu.memory_space<vmem>>, %arg2: memref<1x64xf32, #tpu.memory_space<vmem>>, %arg3: memref<16x64xbf16, #tpu.memory_space<vmem>>, %arg4: memref<16x2xf32, #tpu.memory_space<vmem>>, %arg5: memref<1x2xf32, #tpu.memory_space<vmem>>, %arg6: memref<2x2xf32, #tpu.memory_space<vmem>>) attributes {dimension_semantics = [], scalar_prefetch = 0 : i64, scratch_operands = 0 : i64, tpu.core_type = #tpu.core_type<tc>} {
    %c0 = arith.constant 0 : index
    %c0_0 = arith.constant 0 : index
    %0 = vector.load %arg1[%c0, %c0_0] : memref<2x64xf32, #tpu.memory_space<vmem>>, vector<2x64xf32>
    %c0_1 = arith.constant 0 : index
    %c0_2 = arith.constant 0 : index
    %1 = vector.load %arg2[%c0_1, %c0_2] : memref<1x64xf32, #tpu.memory_space<vmem>>, vector<1x64xf32>
    %c0_3 = arith.constant 0 : index
    %c0_4 = arith.constant 0 : index
    %2 = vector.load %arg3[%c0_3, %c0_4] : memref<16x64xbf16, #tpu.memory_space<vmem>>, vector<16x64xbf16>
    %c0_5 = arith.constant 0 : index
    %c0_6 = arith.constant 0 : index
    %3 = vector.load %arg4[%c0_5, %c0_6] : memref<16x2xf32, #tpu.memory_space<vmem>>, vector<16x2xf32>
    %c0_7 = arith.constant 0 : index
    %c0_8 = arith.constant 0 : index
    %4 = vector.load %arg5[%c0_7, %c0_8] : memref<1x2xf32, #tpu.memory_space<vmem>>, vector<1x2xf32>
    %c0_9 = arith.constant 0 : index
    %c0_10 = arith.constant 0 : index
    %c0_11 = arith.constant 0 : index
    %5 = vector.load %arg0[%c0_9, %c0_10, %c0_11] : memref<2x8x2xf32, #tpu.memory_space<vmem>>, vector<2x8x2xf32>
    %6 = vector.shape_cast %5 : vector<2x8x2xf32> to vector<16x2xf32>
    %cst = arith.constant dense<0.000000e+00> : vector<16x64xf32>
    %7 = tpu.matmul %6, %0, %cst {dimension_numbers = #tpu.dot_dimension_numbers<[1], [0], [0], [1], [0, 0, 1, 1], [], []>} : vector<16x2xf32>, vector<2x64xf32>, vector<16x64xf32> -> vector<16x64xf32>
    %8 = vector.broadcast %1 : vector<1x64xf32> to vector<16x64xf32>
    %9 = arith.addf %7, %8 : vector<16x64xf32>
    %10 = vector.shape_cast %9 : vector<16x64xf32> to vector<2x8x64xf32>
    %cst_12 = arith.constant 0.000000e+00 : f32
    %11 = vector.broadcast %cst_12 : f32 to vector<2x16xf32>
    %cst_13 = arith.constant 0.000000e+00 : f32
    %12 = vector.broadcast %cst_13 : f32 to vector<2x16xf32>
    %13 = vector.extract_strided_slice %10 {offsets = [0, 0, 0], sizes = [2, 1, 64], strides = [1, 1, 1]} : vector<2x8x64xf32> to vector<2x1x64xf32>
    %14 = vector.shape_cast %13 : vector<2x1x64xf32> to vector<2x64xf32>
    %15 = arith.truncf %11 : vector<2x16xf32> to vector<2x16xbf16>
    %cst_14 = arith.constant dense<0.000000e+00> : vector<2x64xf32>
    %16 = tpu.matmul %15, %2, %cst_14 {dimension_numbers = #tpu.dot_dimension_numbers<[1], [0], [0], [1], [0, 0, 1, 1], [], []>} : vector<2x16xbf16>, vector<16x64xbf16>, vector<2x64xf32> -> vector<2x64xf32>
    %17 = arith.addf %14, %16 : vector<2x64xf32>
    %18 = arith.negf %17 : vector<2x64xf32>
    %19 = math.exp %18 : vector<2x64xf32>
    %cst_15 = arith.constant 1.000000e+00 : f32
    %20 = vector.broadcast %cst_15 : f32 to vector<2x64xf32>
    %21 = arith.addf %20, %19 : vector<2x64xf32>
    %22 = arith.divf %20, %21 : vector<2x64xf32>
    %23 = math.tanh %17 : vector<2x64xf32>
    %24 = vector.extract_strided_slice %22 {offsets = [0, 0], sizes = [2, 16], strides = [1, 1]} : vector<2x64xf32> to vector<2x16xf32>
    %25 = vector.extract_strided_slice %22 {offsets = [0, 16], sizes = [2, 16], strides = [1, 1]} : vector<2x64xf32> to vector<2x16xf32>
    %26 = vector.extract_strided_slice %23 {offsets = [0, 32], sizes = [2, 16], strides = [1, 1]} : vector<2x64xf32> to vector<2x16xf32>
    %27 = vector.extract_strided_slice %22 {offsets = [0, 48], sizes = [2, 16], strides = [1, 1]} : vector<2x64xf32> to vector<2x16xf32>
    %28 = arith.mulf %25, %12 : vector<2x16xf32>
    %29 = arith.mulf %24, %26 : vector<2x16xf32>
    %30 = arith.addf %28, %29 : vector<2x16xf32>
    %31 = math.tanh %30 : vector<2x16xf32>
    %32 = arith.mulf %27, %31 : vector<2x16xf32>
    %33 = vector.extract_strided_slice %10 {offsets = [0, 1, 0], sizes = [2, 1, 64], strides = [1, 1, 1]} : vector<2x8x64xf32> to vector<2x1x64xf32>
    %34 = vector.shape_cast %33 : vector<2x1x64xf32> to vector<2x64xf32>
    %35 = arith.truncf %32 : vector<2x16xf32> to vector<2x16xbf16>
    %cst_16 = arith.constant dense<0.000000e+00> : vector<2x64xf32>
    %36 = tpu.matmul %35, %2, %cst_16 {dimension_numbers = #tpu.dot_dimension_numbers<[1], [0], [0], [1], [0, 0, 1, 1], [], []>} : vector<2x16xbf16>, vector<16x64xbf16>, vector<2x64xf32> -> vector<2x64xf32>
    %37 = arith.addf %34, %36 : vector<2x64xf32>
    %38 = arith.negf %37 : vector<2x64xf32>
    %39 = math.exp %38 : vector<2x64xf32>
    %cst_17 = arith.constant 1.000000e+00 : f32
    %40 = vector.broadcast %cst_17 : f32 to vector<2x64xf32>
    %41 = arith.addf %40, %39 : vector<2x64xf32>
    %42 = arith.divf %40, %41 : vector<2x64xf32>
    %43 = math.tanh %37 : vector<2x64xf32>
    %44 = vector.extract_strided_slice %42 {offsets = [0, 0], sizes = [2, 16], strides = [1, 1]} : vector<2x64xf32> to vector<2x16xf32>
    %45 = vector.extract_strided_slice %42 {offsets = [0, 16], sizes = [2, 16], strides = [1, 1]} : vector<2x64xf32> to vector<2x16xf32>
    %46 = vector.extract_strided_slice %43 {offsets = [0, 32], sizes = [2, 16], strides = [1, 1]} : vector<2x64xf32> to vector<2x16xf32>
    %47 = vector.extract_strided_slice %42 {offsets = [0, 48], sizes = [2, 16], strides = [1, 1]} : vector<2x64xf32> to vector<2x16xf32>
    %48 = arith.mulf %45, %30 : vector<2x16xf32>
    %49 = arith.mulf %44, %46 : vector<2x16xf32>
    %50 = arith.addf %48, %49 : vector<2x16xf32>
    %51 = math.tanh %50 : vector<2x16xf32>
    %52 = arith.mulf %47, %51 : vector<2x16xf32>
    %53 = vector.extract_strided_slice %10 {offsets = [0, 2, 0], sizes = [2, 1, 64], strides = [1, 1, 1]} : vector<2x8x64xf32> to vector<2x1x64xf32>
    %54 = vector.shape_cast %53 : vector<2x1x64xf32> to vector<2x64xf32>
    %55 = arith.truncf %52 : vector<2x16xf32> to vector<2x16xbf16>
    %cst_18 = arith.constant dense<0.000000e+00> : vector<2x64xf32>
    %56 = tpu.matmul %55, %2, %cst_18 {dimension_numbers = #tpu.dot_dimension_numbers<[1], [0], [0], [1], [0, 0, 1, 1], [], []>} : vector<2x16xbf16>, vector<16x64xbf16>, vector<2x64xf32> -> vector<2x64xf32>
    %57 = arith.addf %54, %56 : vector<2x64xf32>
    %58 = arith.negf %57 : vector<2x64xf32>
    %59 = math.exp %58 : vector<2x64xf32>
    %cst_19 = arith.constant 1.000000e+00 : f32
    %60 = vector.broadcast %cst_19 : f32 to vector<2x64xf32>
    %61 = arith.addf %60, %59 : vector<2x64xf32>
    %62 = arith.divf %60, %61 : vector<2x64xf32>
    %63 = math.tanh %57 : vector<2x64xf32>
    %64 = vector.extract_strided_slice %62 {offsets = [0, 0], sizes = [2, 16], strides = [1, 1]} : vector<2x64xf32> to vector<2x16xf32>
    %65 = vector.extract_strided_slice %62 {offsets = [0, 16], sizes = [2, 16], strides = [1, 1]} : vector<2x64xf32> to vector<2x16xf32>
    %66 = vector.extract_strided_slice %63 {offsets = [0, 32], sizes = [2, 16], strides = [1, 1]} : vector<2x64xf32> to vector<2x16xf32>
    %67 = vector.extract_strided_slice %62 {offsets = [0, 48], sizes = [2, 16], strides = [1, 1]} : vector<2x64xf32> to vector<2x16xf32>
    %68 = arith.mulf %65, %50 : vector<2x16xf32>
    %69 = arith.mulf %64, %66 : vector<2x16xf32>
    %70 = arith.addf %68, %69 : vector<2x16xf32>
    %71 = math.tanh %70 : vector<2x16xf32>
    %72 = arith.mulf %67, %71 : vector<2x16xf32>
    %73 = vector.extract_strided_slice %10 {offsets = [0, 3, 0], sizes = [2, 1, 64], strides = [1, 1, 1]} : vector<2x8x64xf32> to vector<2x1x64xf32>
    %74 = vector.shape_cast %73 : vector<2x1x64xf32> to vector<2x64xf32>
    %75 = arith.truncf %72 : vector<2x16xf32> to vector<2x16xbf16>
    %cst_20 = arith.constant dense<0.000000e+00> : vector<2x64xf32>
    %76 = tpu.matmul %75, %2, %cst_20 {dimension_numbers = #tpu.dot_dimension_numbers<[1], [0], [0], [1], [0, 0, 1, 1], [], []>} : vector<2x16xbf16>, vector<16x64xbf16>, vector<2x64xf32> -> vector<2x64xf32>
    %77 = arith.addf %74, %76 : vector<2x64xf32>
    %78 = arith.negf %77 : vector<2x64xf32>
    %79 = math.exp %78 : vector<2x64xf32>
    %cst_21 = arith.constant 1.000000e+00 : f32
    %80 = vector.broadcast %cst_21 : f32 to vector<2x64xf32>
    %81 = arith.addf %80, %79 : vector<2x64xf32>
    %82 = arith.divf %80, %81 : vector<2x64xf32>
    %83 = math.tanh %77 : vector<2x64xf32>
    %84 = vector.extract_strided_slice %82 {offsets = [0, 0], sizes = [2, 16], strides = [1, 1]} : vector<2x64xf32> to vector<2x16xf32>
    %85 = vector.extract_strided_slice %82 {offsets = [0, 16], sizes = [2, 16], strides = [1, 1]} : vector<2x64xf32> to vector<2x16xf32>
    %86 = vector.extract_strided_slice %83 {offsets = [0, 32], sizes = [2, 16], strides = [1, 1]} : vector<2x64xf32> to vector<2x16xf32>
    %87 = vector.extract_strided_slice %82 {offsets = [0, 48], sizes = [2, 16], strides = [1, 1]} : vector<2x64xf32> to vector<2x16xf32>
    %88 = arith.mulf %85, %70 : vector<2x16xf32>
    %89 = arith.mulf %84, %86 : vector<2x16xf32>
    %90 = arith.addf %88, %89 : vector<2x16xf32>
    %91 = math.tanh %90 : vector<2x16xf32>
    %92 = arith.mulf %87, %91 : vector<2x16xf32>
    %93 = vector.extract_strided_slice %10 {offsets = [0, 4, 0], sizes = [2, 1, 64], strides = [1, 1, 1]} : vector<2x8x64xf32> to vector<2x1x64xf32>
    %94 = vector.shape_cast %93 : vector<2x1x64xf32> to vector<2x64xf32>
    %95 = arith.truncf %92 : vector<2x16xf32> to vector<2x16xbf16>
    %cst_22 = arith.constant dense<0.000000e+00> : vector<2x64xf32>
    %96 = tpu.matmul %95, %2, %cst_22 {dimension_numbers = #tpu.dot_dimension_numbers<[1], [0], [0], [1], [0, 0, 1, 1], [], []>} : vector<2x16xbf16>, vector<16x64xbf16>, vector<2x64xf32> -> vector<2x64xf32>
    %97 = arith.addf %94, %96 : vector<2x64xf32>
    %98 = arith.negf %97 : vector<2x64xf32>
    %99 = math.exp %98 : vector<2x64xf32>
    %cst_23 = arith.constant 1.000000e+00 : f32
    %100 = vector.broadcast %cst_23 : f32 to vector<2x64xf32>
    %101 = arith.addf %100, %99 : vector<2x64xf32>
    %102 = arith.divf %100, %101 : vector<2x64xf32>
    %103 = math.tanh %97 : vector<2x64xf32>
    %104 = vector.extract_strided_slice %102 {offsets = [0, 0], sizes = [2, 16], strides = [1, 1]} : vector<2x64xf32> to vector<2x16xf32>
    %105 = vector.extract_strided_slice %102 {offsets = [0, 16], sizes = [2, 16], strides = [1, 1]} : vector<2x64xf32> to vector<2x16xf32>
    %106 = vector.extract_strided_slice %103 {offsets = [0, 32], sizes = [2, 16], strides = [1, 1]} : vector<2x64xf32> to vector<2x16xf32>
    %107 = vector.extract_strided_slice %102 {offsets = [0, 48], sizes = [2, 16], strides = [1, 1]} : vector<2x64xf32> to vector<2x16xf32>
    %108 = arith.mulf %105, %90 : vector<2x16xf32>
    %109 = arith.mulf %104, %106 : vector<2x16xf32>
    %110 = arith.addf %108, %109 : vector<2x16xf32>
    %111 = math.tanh %110 : vector<2x16xf32>
    %112 = arith.mulf %107, %111 : vector<2x16xf32>
    %113 = vector.extract_strided_slice %10 {offsets = [0, 5, 0], sizes = [2, 1, 64], strides = [1, 1, 1]} : vector<2x8x64xf32> to vector<2x1x64xf32>
    %114 = vector.shape_cast %113 : vector<2x1x64xf32> to vector<2x64xf32>
    %115 = arith.truncf %112 : vector<2x16xf32> to vector<2x16xbf16>
    %cst_24 = arith.constant dense<0.000000e+00> : vector<2x64xf32>
    %116 = tpu.matmul %115, %2, %cst_24 {dimension_numbers = #tpu.dot_dimension_numbers<[1], [0], [0], [1], [0, 0, 1, 1], [], []>} : vector<2x16xbf16>, vector<16x64xbf16>, vector<2x64xf32> -> vector<2x64xf32>
    %117 = arith.addf %114, %116 : vector<2x64xf32>
    %118 = arith.negf %117 : vector<2x64xf32>
    %119 = math.exp %118 : vector<2x64xf32>
    %cst_25 = arith.constant 1.000000e+00 : f32
    %120 = vector.broadcast %cst_25 : f32 to vector<2x64xf32>
    %121 = arith.addf %120, %119 : vector<2x64xf32>
    %122 = arith.divf %120, %121 : vector<2x64xf32>
    %123 = math.tanh %117 : vector<2x64xf32>
    %124 = vector.extract_strided_slice %122 {offsets = [0, 0], sizes = [2, 16], strides = [1, 1]} : vector<2x64xf32> to vector<2x16xf32>
    %125 = vector.extract_strided_slice %122 {offsets = [0, 16], sizes = [2, 16], strides = [1, 1]} : vector<2x64xf32> to vector<2x16xf32>
    %126 = vector.extract_strided_slice %123 {offsets = [0, 32], sizes = [2, 16], strides = [1, 1]} : vector<2x64xf32> to vector<2x16xf32>
    %127 = vector.extract_strided_slice %122 {offsets = [0, 48], sizes = [2, 16], strides = [1, 1]} : vector<2x64xf32> to vector<2x16xf32>
    %128 = arith.mulf %125, %110 : vector<2x16xf32>
    %129 = arith.mulf %124, %126 : vector<2x16xf32>
    %130 = arith.addf %128, %129 : vector<2x16xf32>
    %131 = math.tanh %130 : vector<2x16xf32>
    %132 = arith.mulf %127, %131 : vector<2x16xf32>
    %133 = vector.extract_strided_slice %10 {offsets = [0, 6, 0], sizes = [2, 1, 64], strides = [1, 1, 1]} : vector<2x8x64xf32> to vector<2x1x64xf32>
    %134 = vector.shape_cast %133 : vector<2x1x64xf32> to vector<2x64xf32>
    %135 = arith.truncf %132 : vector<2x16xf32> to vector<2x16xbf16>
    %cst_26 = arith.constant dense<0.000000e+00> : vector<2x64xf32>
    %136 = tpu.matmul %135, %2, %cst_26 {dimension_numbers = #tpu.dot_dimension_numbers<[1], [0], [0], [1], [0, 0, 1, 1], [], []>} : vector<2x16xbf16>, vector<16x64xbf16>, vector<2x64xf32> -> vector<2x64xf32>
    %137 = arith.addf %134, %136 : vector<2x64xf32>
    %138 = arith.negf %137 : vector<2x64xf32>
    %139 = math.exp %138 : vector<2x64xf32>
    %cst_27 = arith.constant 1.000000e+00 : f32
    %140 = vector.broadcast %cst_27 : f32 to vector<2x64xf32>
    %141 = arith.addf %140, %139 : vector<2x64xf32>
    %142 = arith.divf %140, %141 : vector<2x64xf32>
    %143 = math.tanh %137 : vector<2x64xf32>
    %144 = vector.extract_strided_slice %142 {offsets = [0, 0], sizes = [2, 16], strides = [1, 1]} : vector<2x64xf32> to vector<2x16xf32>
    %145 = vector.extract_strided_slice %142 {offsets = [0, 16], sizes = [2, 16], strides = [1, 1]} : vector<2x64xf32> to vector<2x16xf32>
    %146 = vector.extract_strided_slice %143 {offsets = [0, 32], sizes = [2, 16], strides = [1, 1]} : vector<2x64xf32> to vector<2x16xf32>
    %147 = vector.extract_strided_slice %142 {offsets = [0, 48], sizes = [2, 16], strides = [1, 1]} : vector<2x64xf32> to vector<2x16xf32>
    %148 = arith.mulf %145, %130 : vector<2x16xf32>
    %149 = arith.mulf %144, %146 : vector<2x16xf32>
    %150 = arith.addf %148, %149 : vector<2x16xf32>
    %151 = math.tanh %150 : vector<2x16xf32>
    %152 = arith.mulf %147, %151 : vector<2x16xf32>
    %153 = vector.extract_strided_slice %10 {offsets = [0, 7, 0], sizes = [2, 1, 64], strides = [1, 1, 1]} : vector<2x8x64xf32> to vector<2x1x64xf32>
    %154 = vector.shape_cast %153 : vector<2x1x64xf32> to vector<2x64xf32>
    %155 = arith.truncf %152 : vector<2x16xf32> to vector<2x16xbf16>
    %cst_28 = arith.constant dense<0.000000e+00> : vector<2x64xf32>
    %156 = tpu.matmul %155, %2, %cst_28 {dimension_numbers = #tpu.dot_dimension_numbers<[1], [0], [0], [1], [0, 0, 1, 1], [], []>} : vector<2x16xbf16>, vector<16x64xbf16>, vector<2x64xf32> -> vector<2x64xf32>
    %157 = arith.addf %154, %156 : vector<2x64xf32>
    %158 = arith.negf %157 : vector<2x64xf32>
    %159 = math.exp %158 : vector<2x64xf32>
    %cst_29 = arith.constant 1.000000e+00 : f32
    %160 = vector.broadcast %cst_29 : f32 to vector<2x64xf32>
    %161 = arith.addf %160, %159 : vector<2x64xf32>
    %162 = arith.divf %160, %161 : vector<2x64xf32>
    %163 = math.tanh %157 : vector<2x64xf32>
    %164 = vector.extract_strided_slice %162 {offsets = [0, 0], sizes = [2, 16], strides = [1, 1]} : vector<2x64xf32> to vector<2x16xf32>
    %165 = vector.extract_strided_slice %162 {offsets = [0, 16], sizes = [2, 16], strides = [1, 1]} : vector<2x64xf32> to vector<2x16xf32>
    %166 = vector.extract_strided_slice %163 {offsets = [0, 32], sizes = [2, 16], strides = [1, 1]} : vector<2x64xf32> to vector<2x16xf32>
    %167 = vector.extract_strided_slice %162 {offsets = [0, 48], sizes = [2, 16], strides = [1, 1]} : vector<2x64xf32> to vector<2x16xf32>
    %168 = arith.mulf %165, %150 : vector<2x16xf32>
    %169 = arith.mulf %164, %166 : vector<2x16xf32>
    %170 = arith.addf %168, %169 : vector<2x16xf32>
    %171 = math.tanh %170 : vector<2x16xf32>
    %172 = arith.mulf %167, %171 : vector<2x16xf32>
    %173 = arith.negf %172 : vector<2x16xf32>
    %174 = math.exp %173 : vector<2x16xf32>
    %cst_30 = arith.constant 1.000000e+00 : f32
    %175 = vector.broadcast %cst_30 : f32 to vector<2x16xf32>
    %176 = arith.addf %175, %174 : vector<2x16xf32>
    %177 = arith.divf %175, %176 : vector<2x16xf32>
    %cst_31 = arith.constant dense<0.000000e+00> : vector<2x2xf32>
    %178 = tpu.matmul %177, %3, %cst_31 {dimension_numbers = #tpu.dot_dimension_numbers<[1], [0], [0], [1], [0, 0, 1, 1], [], []>} : vector<2x16xf32>, vector<16x2xf32>, vector<2x2xf32> -> vector<2x2xf32>
    %179 = vector.broadcast %4 : vector<1x2xf32> to vector<2x2xf32>
    %180 = arith.addf %178, %179 : vector<2x2xf32>
    %181 = arith.negf %180 : vector<2x2xf32>
    %182 = math.exp %181 : vector<2x2xf32>
    %cst_32 = arith.constant 1.000000e+00 : f32
    %183 = vector.broadcast %cst_32 : f32 to vector<2x2xf32>
    %184 = arith.addf %183, %182 : vector<2x2xf32>
    %185 = arith.divf %183, %184 : vector<2x2xf32>
    %c0_33 = arith.constant 0 : index
    %c0_34 = arith.constant 0 : index
    %186 = vector.load %arg6[%c0_33, %c0_34] : memref<2x2xf32, #tpu.memory_space<vmem>>, vector<2x2xf32>
    tpu.vector_store %arg6[%c0_33, %c0_34], %185 {strides = array<i32>} : memref<2x2xf32, #tpu.memory_space<vmem>>, vector<2x2xf32>,
    return
  }
}

</mosaic_0001>

<llo_original>
// kernel: lstm_sigmoid_policy_forward.1
$region0: #{lstm_sigmoid_policy_forward.1}
  #allocation0 [shape = 'u32[]', space=smem, size = 0x4, offset = 0x4, fixed_abs, tag = 'smem constant byte address 0x4 - core index']
  #allocation1 [shape = 'u32[72,128]{1,0:T(1,128)}', space=vmem, size = 0x9000, scoped, tag = 'internal scratch']
  %s0 = inlined_call_operand.vmem [shape: f32[2,8,2], index: 0, kind: input, shape index: {}]
  %s1 = inlined_call_operand.vmem [shape: f32[2,64], index: 1, kind: input, shape index: {}]
  %s2 = inlined_call_operand.vmem [shape: f32[1,64], index: 2, kind: input, shape index: {}]
  %s3 = inlined_call_operand.vmem [shape: bf16[16,64], index: 3, kind: input, shape index: {}]
  %s4 = inlined_call_operand.vmem [shape: f32[16,2], index: 4, kind: input, shape index: {}]
  %s5 = inlined_call_operand.vmem [shape: f32[1,2], index: 5, kind: input, shape index: {}]
  %s6 = inlined_call_operand.hbm [shape: f32[2,2], index: 6, kind: output, shape index: {}]
  %s7 = sld [smem:[#allocation0]]
  $region34: #{lstm_sigmoid_policy_forward.1} parent=0
    _
  %s9 = ssub.s32 1, %s7
  %s10 = scalar_select 0, %s9, %s7
  $region1: #{lstm_sigmoid_policy_forward.1} parent=0
    #allocation2 [shape = 'u8[1024]{0}', space=vmem, size = 0x400, scoped, tag = 'output window, operand 0, single buffered']
    #allocation3 [shape = 's32[1]{0}', space=sflag, size = 0x4, scoped, tag = 'scoped memory for lstm_sigmoid_policy_forward.1']
    %11 = vsyncpa [#allocation3], 0
    // Predicated region
    $region2: #{lstm_sigmoid_policy_forward.1} parent=1 // pred_check
      _
    $region3: #{lstm_sigmoid_policy_forward.1} parent=1 // pred_check_branch
      %13 = sbr.rel (0) target = $region5
    $region4: #{lstm_sigmoid_policy_forward.1} parent=1 // pred_region
      _
    $region5: #{lstm_sigmoid_policy_forward.1} parent=1 // pred_fallthru
      _
    // Predicated region
    $region6: #{lstm_sigmoid_policy_forward.1} parent=1 // pred_check
      _
    $region7: #{lstm_sigmoid_policy_forward.1} parent=1 // pred_check_branch
      %15 = sbr.rel (0) target = $region9
    $region8: #{lstm_sigmoid_policy_forward.1} parent=1 // pred_region
      _
    $region9: #{lstm_sigmoid_policy_forward.1} parent=1 // pred_fallthru
      _
    // Predicated region
    $region10: #{lstm_sigmoid_policy_forward.1} parent=1 // pred_check
      _
    $region11: #{lstm_sigmoid_policy_forward.1} parent=1 // pred_check_branch
      %17 = sbr.rel (0) target = $region13
    $region12: #{lstm_sigmoid_policy_forward.1} parent=1 // pred_region
      _
    $region13: #{lstm_sigmoid_policy_forward.1} parent=1 // pred_fallthru
      _
    // Predicated region
    $region14: #{lstm_sigmoid_policy_forward.1} parent=1 // pred_check
      _
    $region15: #{lstm_sigmoid_policy_forward.1} parent=1 // pred_check_branch
      %19 = sbr.rel (0) target = $region17
    $region16: #{lstm_sigmoid_policy_forward.1} parent=1 // pred_region
      _
    $region17: #{lstm_sigmoid_policy_forward.1} parent=1 // pred_fallthru
      _
    // Predicated region
    $region18: #{lstm_sigmoid_policy_forward.1} parent=1 // pred_check
      _
    $region19: #{lstm_sigmoid_policy_forward.1} parent=1 // pred_check_branch
      %21 = sbr.rel (0) target = $region21
    $region20: #{lstm_sigmoid_policy_forward.1} parent=1 // pred_region
      _
    $region21: #{lstm_sigmoid_policy_forward.1} parent=1 // pred_fallthru
      _
    // Predicated region
    $region22: #{lstm_sigmoid_policy_forward.1} parent=1 // pred_check
      _
    $region23: #{lstm_sigmoid_policy_forward.1} parent=1 // pred_check_branch
      %23 = sbr.rel (0) target = $region25
    $region24: #{lstm_sigmoid_policy_forward.1} parent=1 // pred_region
      _
    $region25: #{lstm_sigmoid_policy_forward.1} parent=1 // pred_fallthru
      _
    %v25 = vld [vmem:[%s1] sm:$0x3]
    %v26 = vld [vmem:[%s2] sm:$0x1]
    %v27 = vld [vmem:[%s3] sm:$0xf]
    %v28 = vld [vmem:[%s3 + $0x4] sm:$0xf]
    %v29 = vld [vmem:[%s4] sm:$0xff]
    %v30 = vld [vmem:[%s4 + $0x8] sm:$0xff]
    %v31 = vld [vmem:[%s5] sm:$0x1]
    %v32 = vld [vmem:[%s0] sm:$0xff]
    %v33 = vld [vmem:[%s0 + $0x8] sm:$0xff]
    %v35 = vperm.slane %v26, 0
    %vm37 = vcmask 15360
    %v39 = vsel %vm37, %v32, 0
    %v42 = vsel %vm37, %v33, 0
    %vm44 = vcmask 1041408
    %v46 = vsel %vm44, %v25, 0
    %48 = vmatpush.msra.mxu0 0.0
    %49 = vmatpush.msra.mxu0 0.0
    %50 = vmatpush.msra.mxu0 0.0
    %51 = vmatpush.msra.mxu0 0.0
    %52 = vmatpush.msra.mxu0 0.0
    %53 = vmatpush.msra.mxu0 0.0
    %54 = vmatpush.msra.mxu0 0.0
    %55 = vmatpush.msra.mxu0 0.0
    %56 = vmatpush.msra.mxu0 0.0
    %57 = vmatpush.msra.mxu0 0.0
    %58 = vmatpush.msra.mxu0 0.0
    %59 = vmatpush.msra.mxu0 0.0
    %60 = vmatpush.msra.mxu0 0.0
    %61 = vmatpush.msra.mxu0 0.0
    %62 = vmatpush.msra.mxu0 0.0
    %63 = vmatpush.msra.mxu0 %v46
    %64 = vmatmul.f32.gmra.mxu0 %v39
    %v65 = vpop.f32.mrf.mxu0
    %v66 = vadd.f32 %v35, %v65
    %67 = vmatmul.f32.gmra.mxu0 %v42
    %v68 = vpop.f32.mrf.mxu0
    %v69 = vadd.f32 %v35, %v68
    %70 = vdwg.mxu0
    %v73 = vunpack.c.l.b16 %v27
    %v74 = vunpack.c.l.b16 %v28
    %v75 = vpack.c.b16 %v74, %v73
    %vm77 = vcmask 130048
    %v79 = vsel %vm77, 0, 0
    %81 = vmatpush.bf16.msra.mxu0 0
    %82 = vmatpush.bf16.msra.mxu0 0
    %83 = vmatpush.bf16.msra.mxu0 0
    %84 = vmatpush.bf16.msra.mxu0 0
    %85 = vmatpush.bf16.msra.mxu0 0
    %86 = vmatpush.bf16.msra.mxu0 0
    %87 = vmatpush.bf16.msra.mxu0 0
    %88 = vmatpush.bf16.msra.mxu0 %v75
    %89 = vmatmul.bf16.gmra.mxu0 %v79
    %v90 = vpop.f32.mrf.mxu0
    %v91 = vadd.f32 0.0, %v90
    %v92 = vpop.f32.mrf.mxu0
    %93 = vdwg.mxu0
    %v95 = vrot.slane %v91, 1
    %v98 = vadd.f32 %v66, %v91
    %v99 = vadd.f32 %v69, %v95
    %v100 = vxor.u32 %v98, 2147483648
    %v101 = vxor.u32 %v99, 2147483648
    %v102 = vmul.f32 %v100, 1.442695
    %v103 = vpow.pop %v102
    %v104 = vmul.f32 %v101, 1.442695
    %v105 = vpow.pop %v104
    %v106 = vadd.f32 %v103, 1.0
    %v107 = vadd.f32 %v105, 1.0
    %v108 = vrcp.pop %v106
    %v109 = vmul.f32 %v106, %v108
    %v110 = vsub.f32 1.0, %v109
    %v111 = vmul.f32 %v108, %v110
    %v112 = vadd.f32 %v108, %v111
    %vm113 = vweird.f32 %v106
    %vm114 = vweird.f32 %v108
    %vm115 = vmor %vm113, %vm114
    %v116 = vsel %vm115, %v108, %v112
    %v117 = vand.u32 2147483647, %v106
    %vm118 = vcmp.eq.f32.partialorder %v117, 8.507059e+37
    %v119 = vand.u32 %v106, 2147483648
    %v120 = vor.u32 1.1754944e-38, %v119
    %v121 = vsel %vm118, %v120, %v116
    %v122 = vmul.f32 1.0, %v121
    %v123 = vrcp.pop %v107
    %v124 = vmul.f32 %v107, %v123
    %v125 = vsub.f32 1.0, %v124
    %v126 = vmul.f32 %v123, %v125
    %v127 = vadd.f32 %v123, %v126
    %vm128 = vweird.f32 %v107
    %vm129 = vweird.f32 %v123
    %vm130 = vmor %vm128, %vm129
    %v131 = vsel %vm130, %v123, %v127
    %v132 = vand.u32 2147483647, %v107
    %vm133 = vcmp.eq.f32.partialorder %v132, 8.507059e+37
    %v134 = vand.u32 %v107, 2147483648
    %v135 = vor.u32 1.1754944e-38, %v134
    %v136 = vsel %vm133, %v135, %v131
    %v137 = vmul.f32 1.0, %v136
    %v138 = vtanh.pop %v98
    %v139 = vtanh.pop %v99
    %v140 = vmul.f32 %v122, 0.0
    %v141 = vmul.f32 %v137, 0.0
    %144 = vrot.lane.b32.xlu0 %v138, 96
    %v145 = vpop.permute.xlu0 %144
    %146 = vrot.lane.b32.xlu0 %v139, 96
    %v147 = vpop.permute.xlu0 %146
    %v150 = vmul.f32 %v122, %v145
    %v151 = vmul.f32 %v137, %v147
    %154 = vrot.lane.b32.xlu0 %v150, 16
    %v155 = vpop.permute.xlu0 %154
    %156 = vrot.lane.b32.xlu0 %v151, 16
    %v157 = vpop.permute.xlu0 %156
    %v160 = vadd.f32 %v140, %v155
    %v161 = vadd.f32 %v141, %v157
    %v162 = vtanh.pop %v160
    %v163 = vtanh.pop %v161
    %166 = vrot.lane.b32.xlu0 %v162, 32
    %v167 = vpop.permute.xlu0 %166
    %168 = vrot.lane.b32.xlu0 %v163, 32
    %v169 = vpop.permute.xlu0 %168
    %v172 = vmul.f32 %v122, %v167
    %v173 = vmul.f32 %v137, %v169
    %v174 = vpack.c.bf16 %v172, %v172
    %v175 = vpack.c.bf16 %v173, %v173
    %v178 = vunpack.c.l.b16 %v174
    %v179 = vunpack.c.l.b16 %v175
    %v180 = vrot.slane %v179, 7
    %vm181 = vcmask 1041409
    %v182 = vsel %vm181, %v180, %v178
    %v183 = vpack.c.b16 %v182, %v182
    %184 = vrot.lane.b32.xlu0 %v183, 80
    %v185 = vpop.permute.xlu0 %184
    %v187 = vsel %vm77, %v185, 0
    %189 = vmatpush.bf16.msra.mxu0 0
    %190 = vmatpush.bf16.msra.mxu0 0
    %191 = vmatpush.bf16.msra.mxu0 0
    %192 = vmatpush.bf16.msra.mxu0 0
    %193 = vmatpush.bf16.msra.mxu0 0
    %194 = vmatpush.bf16.msra.mxu0 0
    %195 = vmatpush.bf16.msra.mxu0 0
    %196 = vmatpush.bf16.msra.mxu0 %v75
    %197 = vmatmul.bf16.gmra.mxu0 %v187
    %v198 = vpop.f32.mrf.mxu0
    %v199 = vadd.f32 0.0, %v198
    %v200 = vpop.f32.mrf.mxu0
    %201 = vdwg.mxu0
    %v203 = vrot.slane %v199, 7
    %v206 = vadd.f32 %v66, %v203
    %v207 = vadd.f32 %v69, %v199
    %v208 = vxor.u32 %v206, 2147483648
    %v209 = vxor.u32 %v207, 2147483648
    %v210 = vmul.f32 %v208, 1.442695
    %v211 = vpow.pop %v210
    %v212 = vmul.f32 %v209, 1.442695
    %v213 = vpow.pop %v212
    %v214 = vadd.f32 %v211, 1.0
    %v215 = vadd.f32 %v213, 1.0
    %v216 = vrcp.pop %v214
    %v217 = vmul.f32 %v214, %v216
    %v218 = vsub.f32 1.0, %v217
    %v219 = vmul.f32 %v216, %v218
    %v220 = vadd.f32 %v216, %v219
    %vm221 = vweird.f32 %v214
    %vm222 = vweird.f32 %v216
    %vm223 = vmor %vm221, %vm222
    %v224 = vsel %vm223, %v216, %v220
    %v225 = vand.u32 2147483647, %v214
    %vm226 = vcmp.eq.f32.partialorder %v225, 8.507059e+37
    %v227 = vand.u32 %v214, 2147483648
    %v228 = vor.u32 1.1754944e-38, %v227
    %v229 = vsel %vm226, %v228, %v224
    %v230 = vmul.f32 1.0, %v229
    %v231 = vrcp.pop %v215
    %v232 = vmul.f32 %v215, %v231
    %v233 = vsub.f32 1.0, %v232
    %v234 = vmul.f32 %v231, %v233
    %v235 = vadd.f32 %v231, %v234
    %vm236 = vweird.f32 %v215
    %vm237 = vweird.f32 %v231
    %vm238 = vmor %vm236, %vm237
    %v239 = vsel %vm238, %v231, %v235
    %v240 = vand.u32 2147483647, %v215
    %vm241 = vcmp.eq.f32.partialorder %v240, 8.507059e+37
    %v242 = vand.u32 %v215, 2147483648
    %v243 = vor.u32 1.1754944e-38, %v242
    %v244 = vsel %vm241, %v243, %v239
    %v245 = vmul.f32 1.0, %v244
    %v246 = vtanh.pop %v206
    %v247 = vtanh.pop %v207
    %v250 = vrot.slane %v160, 7
    %v251 = vrot.slane %v161, 7
    %v254 = vmul.f32 %v230, %v250
    %v255 = vmul.f32 %v245, %v251
    %258 = vrot.lane.b32.xlu0 %v246, 96
    %v259 = vpop.permute.xlu0 %258
    %260 = vrot.lane.b32.xlu0 %v247, 96
    %v261 = vpop.permute.xlu0 %260
    %v264 = vmul.f32 %v230, %v259
    %v265 = vmul.f32 %v245, %v261
    %268 = vrot.lane.b32.xlu0 %v264, 16
    %v269 = vpop.permute.xlu0 %268
    %270 = vrot.lane.b32.xlu0 %v265, 16
    %v271 = vpop.permute.xlu0 %270
    %v274 = vadd.f32 %v254, %v269
    %v275 = vadd.f32 %v255, %v271
    %v276 = vtanh.pop %v274
    %v277 = vtanh.pop %v275
    %280 = vrot.lane.b32.xlu0 %v276, 32
    %v281 = vpop.permute.xlu0 %280
    %282 = vrot.lane.b32.xlu0 %v277, 32
    %v283 = vpop.permute.xlu0 %282
    %v286 = vmul.f32 %v230, %v281
    %v287 = vmul.f32 %v245, %v283
    %v288 = vpack.c.bf16 %v286, %v286
    %v289 = vpack.c.bf16 %v287, %v287
    %v292 = vunpack.c.l.b16 %v288
    %v293 = vunpack.c.l.b16 %v289
    %v294 = vrot.slane %v292, 1
    %v295 = vsel %vm181, %v293, %v294
    %v296 = vpack.c.b16 %v295, %v295
    %297 = vrot.lane.b32.xlu0 %v296, 80
    %v298 = vpop.permute.xlu0 %297
    %v300 = vsel %vm77, %v298, 0
    %302 = vmatpush.bf16.msra.mxu0 0
    %303 = vmatpush.bf16.msra.mxu0 0
    %304 = vmatpush.bf16.msra.mxu0 0
    %305 = vmatpush.bf16.msra.mxu0 0
    %306 = vmatpush.bf16.msra.mxu0 0
    %307 = vmatpush.bf16.msra.mxu0 0
    %308 = vmatpush.bf16.msra.mxu0 0
    %309 = vmatpush.bf16.msra.mxu0 %v75
    %310 = vmatmul.bf16.gmra.mxu0 %v300
    %v311 = vpop.f32.mrf.mxu0
    %v312 = vadd.f32 0.0, %v311
    %v313 = vpop.f32.mrf.mxu0
    %314 = vdwg.mxu0
    %v316 = vrot.slane %v312, 6
    %v317 = vrot.slane %v312, 7
    %v320 = vadd.f32 %v66, %v316
    %v321 = vadd.f32 %v69, %v317
    %v322 = vxor.u32 %v320, 2147483648
    %v323 = vxor.u32 %v321, 2147483648
    %v324 = vmul.f32 %v322, 1.442695
    %v325 = vpow.pop %v324
    %v326 = vmul.f32 %v323, 1.442695
    %v327 = vpow.pop %v326
    %v328 = vadd.f32 %v325, 1.0
    %v329 = vadd.f32 %v327, 1.0
    %v330 = vrcp.pop %v328
    %v331 = vmul.f32 %v328, %v330
    %v332 = vsub.f32 1.0, %v331
    %v333 = vmul.f32 %v330, %v332
    %v334 = vadd.f32 %v330, %v333
    %vm335 = vweird.f32 %v328
    %vm336 = vweird.f32 %v330
    %vm337 = vmor %vm335, %vm336
    %v338 = vsel %vm337, %v330, %v334
    %v339 = vand.u32 2147483647, %v328
    %vm340 = vcmp.eq.f32.partialorder %v339, 8.507059e+37
    %v341 = vand.u32 %v328, 2147483648
    %v342 = vor.u32 1.1754944e-38, %v341
    %v343 = vsel %vm340, %v342, %v338
    %v344 = vmul.f32 1.0, %v343
    %v345 = vrcp.pop %v329
    %v346 = vmul.f32 %v329, %v345
    %v347 = vsub.f32 1.0, %v346
    %v348 = vmul.f32 %v345, %v347
    %v349 = vadd.f32 %v345, %v348
    %vm350 = vweird.f32 %v329
    %vm351 = vweird.f32 %v345
    %vm352 = vmor %vm350, %vm351
    %v353 = vsel %vm352, %v345, %v349
    %v354 = vand.u32 2147483647, %v329
    %vm355 = vcmp.eq.f32.partialorder %v354, 8.507059e+37
    %v356 = vand.u32 %v329, 2147483648
    %v357 = vor.u32 1.1754944e-38, %v356
    %v358 = vsel %vm355, %v357, %v353
    %v359 = vmul.f32 1.0, %v358
    %v360 = vtanh.pop %v320
    %v361 = vtanh.pop %v321
    %v364 = vrot.slane %v274, 7
    %v365 = vrot.slane %v275, 7
    %v368 = vmul.f32 %v344, %v364
    %v369 = vmul.f32 %v359, %v365
    %372 = vrot.lane.b32.xlu0 %v360, 96
    %v373 = vpop.permute.xlu0 %372
    %374 = vrot.lane.b32.xlu0 %v361, 96
    %v375 = vpop.permute.xlu0 %374
    %v378 = vmul.f32 %v344, %v373
    %v379 = vmul.f32 %v359, %v375
    %382 = vrot.lane.b32.xlu0 %v378, 16
    %v383 = vpop.permute.xlu0 %382
    %384 = vrot.lane.b32.xlu0 %v379, 16
    %v385 = vpop.permute.xlu0 %384
    %v388 = vadd.f32 %v368, %v383
    %v389 = vadd.f32 %v369, %v385
    %v390 = vtanh.pop %v388
    %v391 = vtanh.pop %v389
    %394 = vrot.lane.b32.xlu0 %v390, 32
    %v395 = vpop.permute.xlu0 %394
    %396 = vrot.lane.b32.xlu0 %v391, 32
    %v397 = vpop.permute.xlu0 %396
    %v400 = vmul.f32 %v344, %v395
    %v401 = vmul.f32 %v359, %v397
    %v402 = vpack.c.bf16 %v400, %v400
    %v403 = vpack.c.bf16 %v401, %v401
    %v406 = vunpack.c.l.b16 %v402
    %v407 = vunpack.c.l.b16 %v403
    %v408 = vrot.slane %v406, 2
    %v409 = vrot.slane %v407, 1
    %v410 = vsel %vm181, %v409, %v408
    %v411 = vpack.c.b16 %v410, %v410
    %412 = vrot.lane.b32.xlu0 %v411, 80
    %v413 = vpop.permute.xlu0 %412
    %v415 = vsel %vm77, %v413, 0
    %417 = vmatpush.bf16.msra.mxu0 0
    %418 = vmatpush.bf16.msra.mxu0 0
    %419 = vmatpush.bf16.msra.mxu0 0
    %420 = vmatpush.bf16.msra.mxu0 0
    %421 = vmatpush.bf16.msra.mxu0 0
    %422 = vmatpush.bf16.msra.mxu0 0
    %423 = vmatpush.bf16.msra.mxu0 0
    %424 = vmatpush.bf16.msra.mxu0 %v75
    %425 = vmatmul.bf16.gmra.mxu0 %v415
    %v426 = vpop.f32.mrf.mxu0
    %v427 = vadd.f32 0.0, %v426
    %v428 = vpop.f32.mrf.mxu0
    %429 = vdwg.mxu0
    %v431 = vrot.slane %v427, 5
    %v432 = vrot.slane %v427, 6
    %v435 = vadd.f32 %v66, %v431
    %v436 = vadd.f32 %v69, %v432
    %v437 = vxor.u32 %v435, 2147483648
    %v438 = vxor.u32 %v436, 2147483648
    %v439 = vmul.f32 %v437, 1.442695
    %v440 = vpow.pop %v439
    %v441 = vmul.f32 %v438, 1.442695
    %v442 = vpow.pop %v441
    %v443 = vadd.f32 %v440, 1.0
    %v444 = vadd.f32 %v442, 1.0
    %v445 = vrcp.pop %v443
    %v446 = vmul.f32 %v443, %v445
    %v447 = vsub.f32 1.0, %v446
    %v448 = vmul.f32 %v445, %v447
    %v449 = vadd.f32 %v445, %v448
    %vm450 = vweird.f32 %v443
    %vm451 = vweird.f32 %v445
    %vm452 = vmor %vm450, %vm451
    %v453 = vsel %vm452, %v445, %v449
    %v454 = vand.u32 2147483647, %v443
    %vm455 = vcmp.eq.f32.partialorder %v454, 8.507059e+37
    %v456 = vand.u32 %v443, 2147483648
    %v457 = vor.u32 1.1754944e-38, %v456
    %v458 = vsel %vm455, %v457, %v453
    %v459 = vmul.f32 1.0, %v458
    %v460 = vrcp.pop %v444
    %v461 = vmul.f32 %v444, %v460
    %v462 = vsub.f32 1.0, %v461
    %v463 = vmul.f32 %v460, %v462
    %v464 = vadd.f32 %v460, %v463
    %vm465 = vweird.f32 %v444
    %vm466 = vweird.f32 %v460
    %vm467 = vmor %vm465, %vm466
    %v468 = vsel %vm467, %v460, %v464
    %v469 = vand.u32 2147483647, %v444
    %vm470 = vcmp.eq.f32.partialorder %v469, 8.507059e+37
    %v471 = vand.u32 %v444, 2147483648
    %v472 = vor.u32 1.1754944e-38, %v471
    %v473 = vsel %vm470, %v472, %v468
    %v474 = vmul.f32 1.0, %v473
    %v475 = vtanh.pop %v435
    %v476 = vtanh.pop %v436
    %v479 = vrot.slane %v388, 7
    %v480 = vrot.slane %v389, 7
    %v483 = vmul.f32 %v459, %v479
    %v484 = vmul.f32 %v474, %v480
    %487 = vrot.lane.b32.xlu0 %v475, 96
    %v488 = vpop.permute.xlu0 %487
    %489 = vrot.lane.b32.xlu0 %v476, 96
    %v490 = vpop.permute.xlu0 %489
    %v493 = vmul.f32 %v459, %v488
    %v494 = vmul.f32 %v474, %v490
    %497 = vrot.lane.b32.xlu0 %v493, 16
    %v498 = vpop.permute.xlu0 %497
    %499 = vrot.lane.b32.xlu0 %v494, 16
    %v500 = vpop.permute.xlu0 %499
    %v503 = vadd.f32 %v483, %v498
    %v504 = vadd.f32 %v484, %v500
    %v505 = vtanh.pop %v503
    %v506 = vtanh.pop %v504
    %509 = vrot.lane.b32.xlu0 %v505, 32
    %v510 = vpop.permute.xlu0 %509
    %511 = vrot.lane.b32.xlu0 %v506, 32
    %v512 = vpop.permute.xlu0 %511
    %v515 = vmul.f32 %v459, %v510
    %v516 = vmul.f32 %v474, %v512
    %v517 = vpack.c.bf16 %v515, %v515
    %v518 = vpack.c.bf16 %v516, %v516
    %v521 = vunpack.c.l.b16 %v517
    %v522 = vunpack.c.l.b16 %v518
    %v523 = vrot.slane %v521, 3
    %v524 = vrot.slane %v522, 2
    %v525 = vsel %vm181, %v524, %v523
    %v526 = vpack.c.b16 %v525, %v525
    %527 = vrot.lane.b32.xlu0 %v526, 80
    %v528 = vpop.permute.xlu0 %527
    %v530 = vsel %vm77, %v528, 0
    %532 = vmatpush.bf16.msra.mxu0 0
    %533 = vmatpush.bf16.msra.mxu0 0
    %534 = vmatpush.bf16.msra.mxu0 0
    %535 = vmatpush.bf16.msra.mxu0 0
    %536 = vmatpush.bf16.msra.mxu0 0
    %537 = vmatpush.bf16.msra.mxu0 0
    %538 = vmatpush.bf16.msra.mxu0 0
    %539 = vmatpush.bf16.msra.mxu0 %v75
    %540 = vmatmul.bf16.gmra.mxu0 %v530
    %v541 = vpop.f32.mrf.mxu0
    %v542 = vadd.f32 0.0, %v541
    %v543 = vpop.f32.mrf.mxu0
    %544 = vdwg.mxu0
    %v546 = vrot.slane %v542, 4
    %v547 = vrot.slane %v542, 5
    %v550 = vadd.f32 %v66, %v546
    %v551 = vadd.f32 %v69, %v547
    %v552 = vxor.u32 %v550, 2147483648
    %v553 = vxor.u32 %v551, 2147483648
    %v554 = vmul.f32 %v552, 1.442695
    %v555 = vpow.pop %v554
    %v556 = vmul.f32 %v553, 1.442695
    %v557 = vpow.pop %v556
    %v558 = vadd.f32 %v555, 1.0
    %v559 = vadd.f32 %v557, 1.0
    %v560 = vrcp.pop %v558
    %v561 = vmul.f32 %v558, %v560
    %v562 = vsub.f32 1.0, %v561
    %v563 = vmul.f32 %v560, %v562
    %v564 = vadd.f32 %v560, %v563
    %vm565 = vweird.f32 %v558
    %vm566 = vweird.f32 %v560
    %vm567 = vmor %vm565, %vm566
    %v568 = vsel %vm567, %v560, %v564
    %v569 = vand.u32 2147483647, %v558
    %vm570 = vcmp.eq.f32.partialorder %v569, 8.507059e+37
    %v571 = vand.u32 %v558, 2147483648
    %v572 = vor.u32 1.1754944e-38, %v571
    %v573 = vsel %vm570, %v572, %v568
    %v574 = vmul.f32 1.0, %v573
    %v575 = vrcp.pop %v559
    %v576 = vmul.f32 %v559, %v575
    %v577 = vsub.f32 1.0, %v576
    %v578 = vmul.f32 %v575, %v577
    %v579 = vadd.f32 %v575, %v578
    %vm580 = vweird.f32 %v559
    %vm581 = vweird.f32 %v575
    %vm582 = vmor %vm580, %vm581
    %v583 = vsel %vm582, %v575, %v579
    %v584 = vand.u32 2147483647, %v559
    %vm585 = vcmp.eq.f32.partialorder %v584, 8.507059e+37
    %v586 = vand.u32 %v559, 2147483648
    %v587 = vor.u32 1.1754944e-38, %v586
    %v588 = vsel %vm585, %v587, %v583
    %v589 = vmul.f32 1.0, %v588
    %v590 = vtanh.pop %v550
    %v591 = vtanh.pop %v551
    %v594 = vrot.slane %v503, 7
    %v595 = vrot.slane %v504, 7
    %v598 = vmul.f32 %v574, %v594
    %v599 = vmul.f32 %v589, %v595
    %602 = vrot.lane.b32.xlu0 %v590, 96
    %v603 = vpop.permute.xlu0 %602
    %604 = vrot.lane.b32.xlu0 %v591, 96
    %v605 = vpop.permute.xlu0 %604
    %v608 = vmul.f32 %v574, %v603
    %v609 = vmul.f32 %v589, %v605
    %612 = vrot.lane.b32.xlu0 %v608, 16
    %v613 = vpop.permute.xlu0 %612
    %614 = vrot.lane.b32.xlu0 %v609, 16
    %v615 = vpop.permute.xlu0 %614
    %v618 = vadd.f32 %v598, %v613
    %v619 = vadd.f32 %v599, %v615
    %v620 = vtanh.pop %v618
    %v621 = vtanh.pop %v619
    %624 = vrot.lane.b32.xlu0 %v620, 32
    %v625 = vpop.permute.xlu0 %624
    %626 = vrot.lane.b32.xlu0 %v621, 32
    %v627 = vpop.permute.xlu0 %626
    %v630 = vmul.f32 %v574, %v625
    %v631 = vmul.f32 %v589, %v627
    %v632 = vpack.c.bf16 %v630, %v630
    %v633 = vpack.c.bf16 %v631, %v631
    %v636 = vunpack.c.l.b16 %v632
    %v637 = vunpack.c.l.b16 %v633
    %v638 = vrot.slane %v636, 4
    %v639 = vrot.slane %v637, 3
    %v640 = vsel %vm181, %v639, %v638
    %v641 = vpack.c.b16 %v640, %v640
    %642 = vrot.lane.b32.xlu0 %v641, 80
    %v643 = vpop.permute.xlu0 %642
    %v645 = vsel %vm77, %v643, 0
    %647 = vmatpush.bf16.msra.mxu0 0
    %648 = vmatpush.bf16.msra.mxu0 0
    %649 = vmatpush.bf16.msra.mxu0 0
    %650 = vmatpush.bf16.msra.mxu0 0
    %651 = vmatpush.bf16.msra.mxu0 0
    %652 = vmatpush.bf16.msra.mxu0 0
    %653 = vmatpush.bf16.msra.mxu0 0
    %654 = vmatpush.bf16.msra.mxu0 %v75
    %655 = vmatmul.bf16.gmra.mxu0 %v645
    %v656 = vpop.f32.mrf.mxu0
    %v657 = vadd.f32 0.0, %v656
    %v658 = vpop.f32.mrf.mxu0
    %659 = vdwg.mxu0
    %v661 = vrot.slane %v657, 3
    %v662 = vrot.slane %v657, 4
    %v665 = vadd.f32 %v66, %v661
    %v666 = vadd.f32 %v69, %v662
    %v667 = vxor.u32 %v665, 2147483648
    %v668 = vxor.u32 %v666, 2147483648
    %v669 = vmul.f32 %v667, 1.442695
    %v670 = vpow.pop %v669
    %v671 = vmul.f32 %v668, 1.442695
    %v672 = vpow.pop %v671
    %v673 = vadd.f32 %v670, 1.0
    %v674 = vadd.f32 %v672, 1.0
    %v675 = vrcp.pop %v673
    %v676 = vmul.f32 %v673, %v675
    %v677 = vsub.f32 1.0, %v676
    %v678 = vmul.f32 %v675, %v677
    %v679 = vadd.f32 %v675, %v678
    %vm680 = vweird.f32 %v673
    %vm681 = vweird.f32 %v675
    %vm682 = vmor %vm680, %vm681
    %v683 = vsel %vm682, %v675, %v679
    %v684 = vand.u32 2147483647, %v673
    %vm685 = vcmp.eq.f32.partialorder %v684, 8.507059e+37
    %v686 = vand.u32 %v673, 2147483648
    %v687 = vor.u32 1.1754944e-38, %v686
    %v688 = vsel %vm685, %v687, %v683
    %v689 = vmul.f32 1.0, %v688
    %v690 = vrcp.pop %v674
    %v691 = vmul.f32 %v674, %v690
    %v692 = vsub.f32 1.0, %v691
    %v693 = vmul.f32 %v690, %v692
    %v694 = vadd.f32 %v690, %v693
    %vm695 = vweird.f32 %v674
    %vm696 = vweird.f32 %v690
    %vm697 = vmor %vm695, %vm696
    %v698 = vsel %vm697, %v690, %v694
    %v699 = vand.u32 2147483647, %v674
    %vm700 = vcmp.eq.f32.partialorder %v699, 8.507059e+37
    %v701 = vand.u32 %v674, 2147483648
    %v702 = vor.u32 1.1754944e-38, %v701
    %v703 = vsel %vm700, %v702, %v698
    %v704 = vmul.f32 1.0, %v703
    %v705 = vtanh.pop %v665
    %v706 = vtanh.pop %v666
    %v709 = vrot.slane %v618, 7
    %v710 = vrot.slane %v619, 7
    %v713 = vmul.f32 %v689, %v709
    %v714 = vmul.f32 %v704, %v710
    %717 = vrot.lane.b32.xlu0 %v705, 96
    %v718 = vpop.permute.xlu0 %717
    %719 = vrot.lane.b32.xlu0 %v706, 96
    %v720 = vpop.permute.xlu0 %719
    %v723 = vmul.f32 %v689, %v718
    %v724 = vmul.f32 %v704, %v720
    %727 = vrot.lane.b32.xlu0 %v723, 16
    %v728 = vpop.permute.xlu0 %727
    %729 = vrot.lane.b32.xlu0 %v724, 16
    %v730 = vpop.permute.xlu0 %729
    %v733 = vadd.f32 %v713, %v728
    %v734 = vadd.f32 %v714, %v730
    %v735 = vtanh.pop %v733
    %v736 = vtanh.pop %v734
    %739 = vrot.lane.b32.xlu0 %v735, 32
    %v740 = vpop.permute.xlu0 %739
    %741 = vrot.lane.b32.xlu0 %v736, 32
    %v742 = vpop.permute.xlu0 %741
    %v745 = vmul.f32 %v689, %v740
    %v746 = vmul.f32 %v704, %v742
    %v747 = vpack.c.bf16 %v745, %v745
    %v748 = vpack.c.bf16 %v746, %v746
    %v751 = vunpack.c.l.b16 %v747
    %v752 = vunpack.c.l.b16 %v748
    %v753 = vrot.slane %v751, 5
    %v754 = vrot.slane %v752, 4
    %v755 = vsel %vm181, %v754, %v753
    %v756 = vpack.c.b16 %v755, %v755
    %757 = vrot.lane.b32.xlu0 %v756, 80
    %v758 = vpop.permute.xlu0 %757
    %v760 = vsel %vm77, %v758, 0
    %762 = vmatpush.bf16.msra.mxu0 0
    %763 = vmatpush.bf16.msra.mxu0 0
    %764 = vmatpush.bf16.msra.mxu0 0
    %765 = vmatpush.bf16.msra.mxu0 0
    %766 = vmatpush.bf16.msra.mxu0 0
    %767 = vmatpush.bf16.msra.mxu0 0
    %768 = vmatpush.bf16.msra.mxu0 0
    %769 = vmatpush.bf16.msra.mxu0 %v75
    %770 = vmatmul.bf16.gmra.mxu0 %v760
    %v771 = vpop.f32.mrf.mxu0
    %v772 = vadd.f32 0.0, %v771
    %v773 = vpop.f32.mrf.mxu0
    %774 = vdwg.mxu0
    %v776 = vrot.slane %v772, 2
    %v777 = vrot.slane %v772, 3
    %v780 = vadd.f32 %v66, %v776
    %v781 = vadd.f32 %v69, %v777
    %v782 = vxor.u32 %v780, 2147483648
    %v783 = vxor.u32 %v781, 2147483648
    %v784 = vmul.f32 %v782, 1.442695
    %v785 = vpow.pop %v784
    %v786 = vmul.f32 %v783, 1.442695
    %v787 = vpow.pop %v786
    %v788 = vadd.f32 %v785, 1.0
    %v789 = vadd.f32 %v787, 1.0
    %v790 = vrcp.pop %v788
    %v791 = vmul.f32 %v788, %v790
    %v792 = vsub.f32 1.0, %v791
    %v793 = vmul.f32 %v790, %v792
    %v794 = vadd.f32 %v790, %v793
    %vm795 = vweird.f32 %v788
    %vm796 = vweird.f32 %v790
    %vm797 = vmor %vm795, %vm796
    %v798 = vsel %vm797, %v790, %v794
    %v799 = vand.u32 2147483647, %v788
    %vm800 = vcmp.eq.f32.partialorder %v799, 8.507059e+37
    %v801 = vand.u32 %v788, 2147483648
    %v802 = vor.u32 1.1754944e-38, %v801
    %v803 = vsel %vm800, %v802, %v798
    %v804 = vmul.f32 1.0, %v803
    %v805 = vrcp.pop %v789
    %v806 = vmul.f32 %v789, %v805
    %v807 = vsub.f32 1.0, %v806
    %v808 = vmul.f32 %v805, %v807
    %v809 = vadd.f32 %v805, %v808
    %vm810 = vweird.f32 %v789
    %vm811 = vweird.f32 %v805
    %vm812 = vmor %vm810, %vm811
    %v813 = vsel %vm812, %v805, %v809
    %v814 = vand.u32 2147483647, %v789
    %vm815 = vcmp.eq.f32.partialorder %v814, 8.507059e+37
    %v816 = vand.u32 %v789, 2147483648
    %v817 = vor.u32 1.1754944e-38, %v816
    %v818 = vsel %vm815, %v817, %v813
    %v819 = vmul.f32 1.0, %v818
    %v820 = vtanh.pop %v780
    %v821 = vtanh.pop %v781
    %v824 = vrot.slane %v733, 7
    %v825 = vrot.slane %v734, 7
    %v828 = vmul.f32 %v804, %v824
    %v829 = vmul.f32 %v819, %v825
    %832 = vrot.lane.b32.xlu0 %v820, 96
    %v833 = vpop.permute.xlu0 %832
    %834 = vrot.lane.b32.xlu0 %v821, 96
    %v835 = vpop.permute.xlu0 %834
    %v838 = vmul.f32 %v804, %v833
    %v839 = vmul.f32 %v819, %v835
    %842 = vrot.lane.b32.xlu0 %v838, 16
    %v843 = vpop.permute.xlu0 %842
    %844 = vrot.lane.b32.xlu0 %v839, 16
    %v845 = vpop.permute.xlu0 %844
    %v848 = vadd.f32 %v828, %v843
    %v849 = vadd.f32 %v829, %v845
    %v850 = vtanh.pop %v848
    %v851 = vtanh.pop %v849
    %854 = vrot.lane.b32.xlu0 %v850, 32
    %v855 = vpop.permute.xlu0 %854
    %856 = vrot.lane.b32.xlu0 %v851, 32
    %v857 = vpop.permute.xlu0 %856
    %v860 = vmul.f32 %v804, %v855
    %v861 = vmul.f32 %v819, %v857
    %v862 = vpack.c.bf16 %v860, %v860
    %v863 = vpack.c.bf16 %v861, %v861
    %v866 = vunpack.c.l.b16 %v862
    %v867 = vunpack.c.l.b16 %v863
    %v868 = vrot.slane %v866, 6
    %v869 = vrot.slane %v867, 5
    %v870 = vsel %vm181, %v869, %v868
    %v871 = vpack.c.b16 %v870, %v870
    %872 = vrot.lane.b32.xlu0 %v871, 80
    %v873 = vpop.permute.xlu0 %872
    %v875 = vsel %vm77, %v873, 0
    %877 = vmatpush.bf16.msra.mxu0 0
    %878 = vmatpush.bf16.msra.mxu0 0
    %879 = vmatpush.bf16.msra.mxu0 0
    %880 = vmatpush.bf16.msra.mxu0 0
    %881 = vmatpush.bf16.msra.mxu0 0
    %882 = vmatpush.bf16.msra.mxu0 0
    %883 = vmatpush.bf16.msra.mxu0 0
    %884 = vmatpush.bf16.msra.mxu0 %v75
    %885 = vmatmul.bf16.gmra.mxu0 %v875
    %v886 = vpop.f32.mrf.mxu0
    %v887 = vadd.f32 0.0, %v886
    %v888 = vpop.f32.mrf.mxu0
    %889 = vdwg.mxu0
    %v891 = vrot.slane %v887, 1
    %v892 = vrot.slane %v887, 2
    %v895 = vadd.f32 %v66, %v891
    %v896 = vadd.f32 %v69, %v892
    %v897 = vxor.u32 %v895, 2147483648
    %v898 = vxor.u32 %v896, 2147483648
    %v899 = vmul.f32 %v897, 1.442695
    %v900 = vpow.pop %v899
    %v901 = vmul.f32 %v898, 1.442695
    %v902 = vpow.pop %v901
    %v903 = vadd.f32 %v900, 1.0
    %v904 = vadd.f32 %v902, 1.0
    %v905 = vrcp.pop %v903
    %v906 = vmul.f32 %v903, %v905
    %v907 = vsub.f32 1.0, %v906
    %v908 = vmul.f32 %v905, %v907
    %v909 = vadd.f32 %v905, %v908
    %vm910 = vweird.f32 %v903
    %vm911 = vweird.f32 %v905
    %vm912 = vmor %vm910, %vm911
    %v913 = vsel %vm912, %v905, %v909
    %v914 = vand.u32 2147483647, %v903
    %vm915 = vcmp.eq.f32.partialorder %v914, 8.507059e+37
    %v916 = vand.u32 %v903, 2147483648
    %v917 = vor.u32 1.1754944e-38, %v916
    %v918 = vsel %vm915, %v917, %v913
    %v919 = vmul.f32 1.0, %v918
    %v920 = vrcp.pop %v904
    %v921 = vmul.f32 %v904, %v920
    %v922 = vsub.f32 1.0, %v921
    %v923 = vmul.f32 %v920, %v922
    %v924 = vadd.f32 %v920, %v923
    %vm925 = vweird.f32 %v904
    %vm926 = vweird.f32 %v920
    %vm927 = vmor %vm925, %vm926
    %v928 = vsel %vm927, %v920, %v924
    %v929 = vand.u32 2147483647, %v904
    %vm930 = vcmp.eq.f32.partialorder %v929, 8.507059e+37
    %v931 = vand.u32 %v904, 2147483648
    %v932 = vor.u32 1.1754944e-38, %v931
    %v933 = vsel %vm930, %v932, %v928
    %v934 = vmul.f32 1.0, %v933
    %v935 = vtanh.pop %v895
    %v936 = vtanh.pop %v896
    %v939 = vrot.slane %v848, 7
    %v940 = vrot.slane %v849, 7
    %v943 = vmul.f32 %v919, %v939
    %v944 = vmul.f32 %v934, %v940
    %947 = vrot.lane.b32.xlu0 %v935, 96
    %v948 = vpop.permute.xlu0 %947
    %949 = vrot.lane.b32.xlu0 %v936, 96
    %v950 = vpop.permute.xlu0 %949
    %v953 = vmul.f32 %v919, %v948
    %v954 = vmul.f32 %v934, %v950
    %957 = vrot.lane.b32.xlu0 %v953, 16
    %v958 = vpop.permute.xlu0 %957
    %959 = vrot.lane.b32.xlu0 %v954, 16
    %v960 = vpop.permute.xlu0 %959
    %v963 = vadd.f32 %v943, %v958
    %v964 = vadd.f32 %v944, %v960
    %v965 = vtanh.pop %v963
    %v966 = vtanh.pop %v964
    %969 = vrot.lane.b32.xlu0 %v965, 32
    %v970 = vpop.permute.xlu0 %969
    %971 = vrot.lane.b32.xlu0 %v966, 32
    %v972 = vpop.permute.xlu0 %971
    %v975 = vmul.f32 %v919, %v970
    %v976 = vmul.f32 %v934, %v972
    %v977 = vxor.u32 %v975, 2147483648
    %v978 = vxor.u32 %v976, 2147483648
    %v979 = vmul.f32 %v977, 1.442695
    %v980 = vpow.pop %v979
    %v981 = vmul.f32 %v978, 1.442695
    %v982 = vpow.pop %v981
    %v983 = vadd.f32 %v980, 1.0
    %v984 = vadd.f32 %v982, 1.0
    %v985 = vrcp.pop %v983
    %v986 = vmul.f32 %v983, %v985
    %v987 = vsub.f32 1.0, %v986
    %v988 = vmul.f32 %v985, %v987
    %v989 = vadd.f32 %v985, %v988
    %vm990 = vweird.f32 %v983
    %vm991 = vweird.f32 %v985
    %vm992 = vmor %vm990, %vm991
    %v993 = vsel %vm992, %v985, %v989
    %v994 = vand.u32 2147483647, %v983
    %vm995 = vcmp.eq.f32.partialorder %v994, 8.507059e+37
    %v996 = vand.u32 %v983, 2147483648
    %v997 = vor.u32 1.1754944e-38, %v996
    %v998 = vsel %vm995, %v997, %v993
    %v999 = vmul.f32 1.0, %v998
    %v1000 = vrcp.pop %v984
    %v1001 = vmul.f32 %v984, %v1000
    %v1002 = vsub.f32 1.0, %v1001
    %v1003 = vmul.f32 %v1000, %v1002
    %v1004 = vadd.f32 %v1000, %v1003
    %vm1005 = vweird.f32 %v984
    %vm1006 = vweird.f32 %v1000
    %vm1007 = vmor %vm1005, %vm1006
    %v1008 = vsel %vm1007, %v1000, %v1004
    %v1009 = vand.u32 2147483647, %v984
    %vm1010 = vcmp.eq.f32.partialorder %v1009, 8.507059e+37
    %v1011 = vand.u32 %v984, 2147483648
    %v1012 = vor.u32 1.1754944e-38, %v1011
    %v1013 = vsel %vm1010, %v1012, %v1008
    %v1014 = vmul.f32 1.0, %v1013
    %v1016 = vperm.slane %v31, 0
    %v1020 = vrot.slane %v999, 7
    %v1021 = vrot.slane %v1014, 6
    %v1022 = vsel %vm181, %v1021, %v1020
    %1023 = vrot.lane.b32.xlu0 %v1022, 80
    %v1024 = vpop.permute.xlu0 %1023
    %v1025 = vsel %vm77, %v1024, 0
    %1027 = vmatpush.msra.mxu0 0.0
    %1028 = vmatpush.msra.mxu0 0.0
    %1029 = vmatpush.msra.mxu0 0.0
    %1030 = vmatpush.msra.mxu0 0.0
    %1031 = vmatpush.msra.mxu0 0.0
    %1032 = vmatpush.msra.mxu0 0.0
    %1033 = vmatpush.msra.mxu0 0.0
    %1034 = vmatpush.msra.mxu0 0.0
    %1035 = vmatpush.msra.mxu0 0.0
    %1036 = vmatpush.msra.mxu0 0.0
    %1037 = vmatpush.msra.mxu0 0.0
    %1038 = vmatpush.msra.mxu0 0.0
    %1039 = vmatpush.msra.mxu0 0.0
    %1040 = vmatpush.msra.mxu0 0.0
    %1041 = vmatpush.msra.mxu0 %v30
    %1042 = vmatpush.msra.mxu0 %v29
    %1043 = vmatmul.f32.gmra.mxu0 %v1025
    %v1044 = vpop.f32.mrf.mxu0
    %v1045 = vadd.f32 %v1016, %v1044
    %1046 = vdwg.mxu0
    %v1047 = vxor.u32 %v1045, 2147483648
    %v1048 = vmul.f32 %v1047, 1.442695
    %v1049 = vpow.pop %v1048
    %v1050 = vadd.f32 %v1049, 1.0
    %v1051 = vrcp.pop %v1050
    %v1052 = vmul.f32 %v1050, %v1051
    %v1053 = vsub.f32 1.0, %v1052
    %v1054 = vmul.f32 %v1051, %v1053
    %v1055 = vadd.f32 %v1051, %v1054
    %vm1056 = vweird.f32 %v1050
    %vm1057 = vweird.f32 %v1051
    %vm1058 = vmor %vm1056, %vm1057
    %v1059 = vsel %vm1058, %v1051, %v1055
    %v1060 = vand.u32 2147483647, %v1050
    %vm1061 = vcmp.eq.f32.partialorder %v1060, 8.507059e+37
    %v1062 = vand.u32 %v1050, 2147483648
    %v1063 = vor.u32 1.1754944e-38, %v1062
    %v1064 = vsel %vm1061, %v1063, %v1059
    %v1065 = vmul.f32 1.0, %v1064
    %vm1066 = vcmask 9216
    %1067 = vst.msk [vmem:[#allocation2] sm:$0x3] %vm1066, %v1065
    // Predicated region
    $region26: #{lstm_sigmoid_policy_forward.1} parent=1 // pred_check
      _
    $region27: #{lstm_sigmoid_policy_forward.1} parent=1 // pred_check_branch
      %1069 = sbr.rel (0) target = $region29
    $region28: #{lstm_sigmoid_policy_forward.1} parent=1 // pred_region
      %1071 = vsyncadd [#allocation3], 0
      %s1073 = sshll.u32 [#allocation2], 4
      %s1074 = int_to_ptr.vmem [resolvable:$true] %s1073
      %s1075 = sshll.u32 %s6, 4
      %s1076 = int_to_ptr.hbm [resolvable:$true] %s1075
      %1078 = dma.vmem_to_hbm [thread:$0]  %s1074, 32, %s1076, [#allocation3]
    $region29: #{lstm_sigmoid_policy_forward.1} parent=1 // pred_fallthru
      _
    // Predicated region
    $region30: #{lstm_sigmoid_policy_forward.1} parent=1 // pred_check
      _
    $region31: #{lstm_sigmoid_policy_forward.1} parent=1 // pred_check_branch
      %1080 = sbr.rel (0) target = $region33
    $region32: #{lstm_sigmoid_policy_forward.1} parent=1 // pred_region
      %1082 = dma.done [#allocation3], 32
    $region33: #{lstm_sigmoid_policy_forward.1} parent=1 // pred_fallthru
      _
    %1083 = vsyncpa [#allocation3], 1

</llo_original>
